<compile_context>
chip_gen: v7x
topology: tpu7x:2x2x1
jax: 0.10.0
libtpu: 0.0.40
codegen_flags: <defaults>
</compile_context>

<pallas_src>
import functools
import math

import jax
import jax.numpy as jnp
from jax.experimental import pallas as pl
from jax.experimental.pallas import tpu as pltpu

_INV_SQRT2 = 1.0 / math.sqrt(2.0)


def _round_up(x, m):
    return (x + m - 1) // m * m


def _mlp_kernel(x_ref, w1_ref, b1_ref, w2_ref, b2_ref, o_ref, acc_ref):
    """One (row-tile, hidden-tile) grid step of fused Linear -> GELU -> Linear."""
    h_idx = pl.program_id(1)

    @pl.when(h_idx == 0)
    def _():
        acc_ref[...] = jnp.zeros_like(acc_ref)

    # fc1 partial: (tm, D_in) @ (D_in, th), f32 accumulation on the MXU.
    h = jnp.dot(x_ref[...], w1_ref[...], preferred_element_type=jnp.float32)
    h = h + b1_ref[...].astype(jnp.float32)
    # Exact (erf-based) GELU in f32, matching PyTorch nn.GELU default.
    h = 0.5 * h * (1.0 + jax.lax.erf(h * _INV_SQRT2))
    # fc2 partial: accumulate (tm, th) @ (th, D_out) into the f32 scratch.
    acc_ref[...] += jnp.dot(h.astype(w2_ref.dtype), w2_ref[...],
                            preferred_element_type=jnp.float32)

    @pl.when(h_idx == pl.num_programs(1) - 1)
    def _():
        y = acc_ref[...] + b2_ref[...].astype(jnp.float32)
        o_ref[...] = y.astype(o_ref.dtype)


@functools.partial(jax.jit, static_argnames=("tm", "th_max", "matmul_dtype"))
def mlp_pallas(x2d, w1, b1, w2, b2, *, tm=256, th_max=512, matmul_dtype=None):
    """Fused MLP on a (N, in_features) slab. Returns (N, out_features)."""
    N, D_in = x2d.shape
    D_hid = w1.shape[1]
    D_out = w2.shape[1]
    out_dtype = x2d.dtype

    if matmul_dtype is not None:
        x2d = x2d.astype(matmul_dtype)
        w1 = w1.astype(matmul_dtype)
        w2 = w2.astype(matmul_dtype)
    mm_dtype = x2d.dtype
    sub = 16 if mm_dtype == jnp.bfloat16 else 8

    # Row tile: fixed size so the grid iterates and Pallas double-buffers x/out;
    # clamp for tiny problems, keep a multiple of the sublane pack.
    tm = min(tm, _round_up(N, sub))
    tm = _round_up(tm, sub)
    n_pad = _round_up(N, tm)

    # Pad feature dims to the 128-lane width (exact: see header comment).
    d_in_p = _round_up(D_in, 128)
    d_hid_p = _round_up(D_hid, 128)
    d_out_p = _round_up(D_out, 128)

    # Hidden (reduction) tile: a multiple of 128 dividing the padded hidden dim,
    # capped at th_max so large MLPs stream weights instead of holding them
    # resident in VMEM.
    th = min(_round_up(th_max, 128), d_hid_p)
    while d_hid_p % th != 0:
        th -= 128

    xp = jnp.pad(x2d, ((0, n_pad - N), (0, d_in_p - D_in)))
    w1p = jnp.pad(w1, ((0, d_in_p - D_in), (0, d_hid_p - D_hid)))
    b1p = jnp.pad(b1, (0, d_hid_p - D_hid)).reshape(1, d_hid_p)
    w2p = jnp.pad(w2, ((0, d_hid_p - D_hid), (0, d_out_p - D_out)))
    b2p = jnp.pad(b2, (0, d_out_p - D_out)).reshape(1, d_out_p)

    grid = (n_pad // tm, d_hid_p // th)

    # Explicit VMEM budget: double-buffered per-step tiles + f32 accumulator,
    # with headroom; clamped to stay safe on v7x's 64 MiB per-core VMEM.
    itemsize = jnp.dtype(mm_dtype).itemsize
    tile_elems = (tm * d_in_p + d_in_p * th + 8 * th +
                  th * d_out_p + 8 * d_out_p + tm * d_out_p)
    vmem_bytes = 2 * tile_elems * itemsize + tm * d_out_p * 4
    vmem_limit = int(min(max(vmem_bytes * 2, 32 * 1024 * 1024),
                         56 * 1024 * 1024))

    y_pad = pl.pallas_call(
        _mlp_kernel,
        out_shape=jax.ShapeDtypeStruct((n_pad, d_out_p), out_dtype),
        grid_spec=pltpu.PrefetchScalarGridSpec(
            num_scalar_prefetch=0,
            grid=grid,
            in_specs=[
                pl.BlockSpec((tm, d_in_p), lambda i, h: (i, 0)),      # x rows
                pl.BlockSpec((d_in_p, th), lambda i, h: (0, h)),      # W1 cols
                pl.BlockSpec((1, th), lambda i, h: (0, h)),           # b1 slice
                pl.BlockSpec((th, d_out_p), lambda i, h: (h, 0)),     # W2 rows
                pl.BlockSpec((1, d_out_p), lambda i, h: (0, 0)),      # b2
            ],
            out_specs=pl.BlockSpec((tm, d_out_p), lambda i, h: (i, 0)),
            scratch_shapes=[pltpu.VMEM((tm, d_out_p), jnp.float32)],
        ),
        compiler_params=pltpu.CompilerParams(
            dimension_semantics=("parallel", "arbitrary"),
            vmem_limit_bytes=vmem_limit),
    )(xp, w1p, b1p, w2p, b2p)

    return y_pad[:N, :D_out]


def mlp_forward(x, w1, b1, w2, b2, **kwargs):
    """x: (..., in_features) -> (..., out_features)."""
    lead = x.shape[:-1]
    d_in = x.shape[-1]
    n = 1
    for s in lead:
        n *= s
    y2d = mlp_pallas(x.reshape(n, d_in), w1, b1, w2, b2, **kwargs)
    return y2d.reshape(*lead, y2d.shape[-1])


def _init_linear(key, fan_in, fan_out, dtype=jnp.float32):
    """Deterministic init mimicking nn.Linear defaults (uniform +-1/sqrt(fan_in)).
    Weight returned as (fan_in, fan_out), i.e. transposed vs. PyTorch storage."""
    kw, kb = jax.random.split(key)
    bound = 1.0 / math.sqrt(fan_in)
    w = jax.random.uniform(kw, (fan_in, fan_out), dtype, -bound, bound)
    b = jax.random.uniform(kb, (fan_out,), dtype, -bound, bound)
    return w, b


if __name__ == "__main__":
    key = jax.random.PRNGKey(0)
    kx, k1, k2 = jax.random.split(key, 3)

    batch, seq = 2, 8
    in_features, hidden_features, out_features = 32, 64, 32

    x = jax.random.normal(kx, (batch, seq, in_features), jnp.float32)
    w1, b1 = _init_linear(k1, in_features, hidden_features)
    w2, b2 = _init_linear(k2, hidden_features, out_features)

    y = mlp_forward(x, w1, b1, w2, b2)
    y = jax.block_until_ready(y)

    # Pure-JAX reference (exact GELU, matching nn.GELU default).
    h_ref = x @ w1 + b1
    h_ref = 0.5 * h_ref * (1.0 + jax.lax.erf(h_ref / math.sqrt(2.0)))
    y_ref = h_ref @ w2 + b2
    assert y.shape == (batch, seq, out_features)
    assert jnp.allclose(y, y_ref, atol=1e-5, rtol=1e-5), "mismatch vs reference"

    print("KERNEL_OK")
</pallas_src>

<mosaic_0001>
module attributes {stable_mosaic.version = 11 : i64} {
  func.func @_mlp_kernel(%arg0: i32, %arg1: i32, %arg2: memref<16x128xf32, #tpu.memory_space<vmem>>, %arg3: memref<128x128xf32, #tpu.memory_space<vmem>>, %arg4: memref<1x128xf32, #tpu.memory_space<vmem>>, %arg5: memref<128x128xf32, #tpu.memory_space<vmem>>, %arg6: memref<1x128xf32, #tpu.memory_space<vmem>>, %arg7: memref<16x128xf32, #tpu.memory_space<vmem>>, %arg8: memref<16x128xf32, #tpu.memory_space<vmem>>) attributes {dimension_semantics = [#tpu.dimension_semantics<parallel>, #tpu.dimension_semantics<arbitrary>], iteration_bounds = array<i64: 1, 1>, scalar_prefetch = 0 : i64, scratch_operands = 1 : i64, tpu.core_type = #tpu.core_type<tc>, window_params = [{transform_indices = @transform_0, window_bounds = array<i64: 16, 128>}, {transform_indices = @transform_1, window_bounds = array<i64: 128, 128>}, {transform_indices = @transform_2, window_bounds = array<i64: 1, 128>}, {transform_indices = @transform_3, window_bounds = array<i64: 128, 128>}, {pipeline_mode = #tpu.pipeline_mode<synchronous>, transform_indices = @transform_4, window_bounds = array<i64: 1, 128>}, {transform_indices = @transform_5, window_bounds = array<i64: 16, 128>}]} {
    %c0_i32 = arith.constant 0 : i32
    %0 = arith.cmpi eq, %arg1, %c0_i32 : i32
    %1 = arith.extui %0 : i1 to i32
    %c0_i32_0 = arith.constant 0 : i32
    %2 = arith.cmpi ne, %1, %c0_i32_0 : i32
    scf.if %2 {
      %cst_18 = arith.constant 0.000000e+00 : f32
      %25 = vector.broadcast %cst_18 : f32 to vector<16x128xf32>
      %c0_19 = arith.constant 0 : index
      %c0_20 = arith.constant 0 : index
      %26 = vector.load %arg8[%c0_19, %c0_20] : memref<16x128xf32, #tpu.memory_space<vmem>>, vector<16x128xf32>
      tpu.vector_store %arg8[%c0_19, %c0_20], %25 {strides = array<i32>} : memref<16x128xf32, #tpu.memory_space<vmem>>, vector<16x128xf32>,
    } else {
    }
    %c0 = arith.constant 0 : index
    %c0_1 = arith.constant 0 : index
    %3 = vector.load %arg2[%c0, %c0_1] : memref<16x128xf32, #tpu.memory_space<vmem>>, vector<16x128xf32>
    %c0_2 = arith.constant 0 : index
    %c0_3 = arith.constant 0 : index
    %4 = vector.load %arg3[%c0_2, %c0_3] : memref<128x128xf32, #tpu.memory_space<vmem>>, vector<128x128xf32>
    %cst = arith.constant dense<0.000000e+00> : vector<16x128xf32>
    %5 = tpu.matmul %3, %4, %cst {dimension_numbers = #tpu.dot_dimension_numbers<[1], [0], [0], [1], [0, 0, 1, 1], [], []>} : vector<16x128xf32>, vector<128x128xf32>, vector<16x128xf32> -> vector<16x128xf32>
    %c0_4 = arith.constant 0 : index
    %c0_5 = arith.constant 0 : index
    %6 = vector.load %arg4[%c0_4, %c0_5] : memref<1x128xf32, #tpu.memory_space<vmem>>, vector<1x128xf32>
    %7 = vector.broadcast %6 : vector<1x128xf32> to vector<16x128xf32>
    %8 = arith.addf %5, %7 : vector<16x128xf32>
    %cst_6 = arith.constant 5.000000e-01 : f32
    %9 = vector.broadcast %cst_6 : f32 to vector<16x128xf32>
    %10 = arith.mulf %9, %8 : vector<16x128xf32>
    %cst_7 = arith.constant 0.707106769 : f32
    %11 = vector.broadcast %cst_7 : f32 to vector<16x128xf32>
    %12 = arith.mulf %8, %11 : vector<16x128xf32>
    %13 = math.erf %12 : vector<16x128xf32>
    %cst_8 = arith.constant 1.000000e+00 : f32
    %14 = vector.broadcast %cst_8 : f32 to vector<16x128xf32>
    %15 = arith.addf %14, %13 : vector<16x128xf32>
    %16 = arith.mulf %10, %15 : vector<16x128xf32>
    %c0_9 = arith.constant 0 : index
    %c0_10 = arith.constant 0 : index
    %17 = vector.load %arg8[%c0_9, %c0_10] : memref<16x128xf32, #tpu.memory_space<vmem>>, vector<16x128xf32>
    %c0_11 = arith.constant 0 : index
    %c0_12 = arith.constant 0 : index
    %18 = vector.load %arg5[%c0_11, %c0_12] : memref<128x128xf32, #tpu.memory_space<vmem>>, vector<128x128xf32>
    %cst_13 = arith.constant dense<0.000000e+00> : vector<16x128xf32>
    %19 = tpu.matmul %16, %18, %cst_13 {dimension_numbers = #tpu.dot_dimension_numbers<[1], [0], [0], [1], [0, 0, 1, 1], [], []>} : vector<16x128xf32>, vector<128x128xf32>, vector<16x128xf32> -> vector<16x128xf32>
    %20 = arith.addf %17, %19 : vector<16x128xf32>
    %c0_14 = arith.constant 0 : index
    %c0_15 = arith.constant 0 : index
    %21 = vector.load %arg8[%c0_14, %c0_15] : memref<16x128xf32, #tpu.memory_space<vmem>>, vector<16x128xf32>
    tpu.vector_store %arg8[%c0_14, %c0_15], %20 {strides = array<i32>} : memref<16x128xf32, #tpu.memory_space<vmem>>, vector<16x128xf32>,
    %c0_i32_16 = arith.constant 0 : i32
    %22 = arith.cmpi eq, %arg1, %c0_i32_16 : i32
    %23 = arith.extui %22 : i1 to i32
    %c0_i32_17 = arith.constant 0 : i32
    %24 = arith.cmpi ne, %23, %c0_i32_17 : i32
    scf.if %24 {
      %c0_18 = arith.constant 0 : index
      %c0_19 = arith.constant 0 : index
      %25 = vector.load %arg8[%c0_18, %c0_19] : memref<16x128xf32, #tpu.memory_space<vmem>>, vector<16x128xf32>
      %c0_20 = arith.constant 0 : index
      %c0_21 = arith.constant 0 : index
      %26 = vector.load %arg6[%c0_20, %c0_21] : memref<1x128xf32, #tpu.memory_space<vmem>>, vector<1x128xf32>
      %27 = vector.broadcast %26 : vector<1x128xf32> to vector<16x128xf32>
      %28 = arith.addf %25, %27 : vector<16x128xf32>
      %c0_22 = arith.constant 0 : index
      %c0_23 = arith.constant 0 : index
      %29 = vector.load %arg7[%c0_22, %c0_23] : memref<16x128xf32, #tpu.memory_space<vmem>>, vector<16x128xf32>
      tpu.vector_store %arg7[%c0_22, %c0_23], %28 {strides = array<i32>} : memref<16x128xf32, #tpu.memory_space<vmem>>, vector<16x128xf32>,
    } else {
    }
    return
  }
  func.func @transform_0(%arg0: i32, %arg1: i32) -> (i32, i32) {
    %c0_i32 = arith.constant 0 : i32
    %c0_i32_0 = arith.constant 0 : i32
    return %arg0, %c0_i32 : i32, i32
  }
  func.func @transform_1(%arg0: i32, %arg1: i32) -> (i32, i32) {
    %c0_i32 = arith.constant 0 : i32
    %c0_i32_0 = arith.constant 0 : i32
    return %c0_i32, %arg1 : i32, i32
  }
  func.func @transform_2(%arg0: i32, %arg1: i32) -> (i32, i32) {
    %c0_i32 = arith.constant 0 : i32
    %c0_i32_0 = arith.constant 0 : i32
    return %c0_i32, %arg1 : i32, i32
  }
  func.func @transform_3(%arg0: i32, %arg1: i32) -> (i32, i32) {
    %c0_i32 = arith.constant 0 : i32
    %c0_i32_0 = arith.constant 0 : i32
    return %arg1, %c0_i32 : i32, i32
  }
  func.func @transform_4(%arg0: i32, %arg1: i32) -> (i32, i32) {
    %c0_i32 = arith.constant 0 : i32
    %c0_i32_0 = arith.constant 0 : i32
    %c0_i32_1 = arith.constant 0 : i32
    return %c0_i32, %c0_i32_0 : i32, i32
  }
  func.func @transform_5(%arg0: i32, %arg1: i32) -> (i32, i32) {
    %c0_i32 = arith.constant 0 : i32
    %c0_i32_0 = arith.constant 0 : i32
    return %arg0, %c0_i32 : i32, i32
  }
}

</mosaic_0001>

<llo_original>
// kernel: mlp_pallas.1
$region0: #{mlp_pallas.1}
  #allocation0 [shape = 'u32[]', space=smem, size = 0x4, offset = 0x4, fixed_abs, tag = 'smem constant byte address 0x4 - core index']
  #allocation1 [shape = 'u32[144,128]{1,0:T(1,128)}', space=vmem, size = 0x12000, scoped, tag = 'internal scratch']
  #allocation2 [shape = 'f32[16,128]{1,0:T(8,128)}', space=vmem, size = 0x2000, scoped, tag = 'scratch operand']
  %s0 = inlined_call_operand.vmem [shape: f32[16,128], index: 0, kind: input, shape index: {}]
  %s1 = inlined_call_operand.vmem [shape: f32[128,128], index: 1, kind: input, shape index: {}]
  %s2 = inlined_call_operand.vmem [shape: f32[1,128], index: 2, kind: input, shape index: {}]
  %s3 = inlined_call_operand.vmem [shape: f32[128,128], index: 3, kind: input, shape index: {}]
  %s4 = inlined_call_operand.vmem [shape: f32[1,128], index: 4, kind: input, shape index: {}]
  %s5 = inlined_call_operand.hbm [shape: f32[16,128], index: 5, kind: output, shape index: {}]
  %s6 = sld [smem:[#allocation0]]
  $region38: #{mlp_pallas.1} parent=0
    _
  %s8 = ssub.s32 1, %s6
  %s9 = scalar_select 0, %s8, %s6
  $region1: #{mlp_pallas.1} parent=0
    #allocation3 [shape = 'u8[8192]{0}', space=vmem, size = 0x2000, scoped, tag = 'output window, operand 0, single buffered']
    #allocation4 [shape = 's32[1]{0}', space=sflag, size = 0x4, scoped, tag = 'scoped memory for mlp_pallas.1']
    %10 = vsyncpa [#allocation4], 0
    // Predicated region
    $region2: #{mlp_pallas.1} parent=1 // pred_check
      _
    $region3: #{mlp_pallas.1} parent=1 // pred_check_branch
      %12 = sbr.rel (0) target = $region5
    $region4: #{mlp_pallas.1} parent=1 // pred_region
      _
    $region5: #{mlp_pallas.1} parent=1 // pred_fallthru
      _
    // Predicated region
    $region6: #{mlp_pallas.1} parent=1 // pred_check
      _
    $region7: #{mlp_pallas.1} parent=1 // pred_check_branch
      %14 = sbr.rel (0) target = $region9
    $region8: #{mlp_pallas.1} parent=1 // pred_region
      _
    $region9: #{mlp_pallas.1} parent=1 // pred_fallthru
      _
    // Predicated region
    $region10: #{mlp_pallas.1} parent=1 // pred_check
      _
    $region11: #{mlp_pallas.1} parent=1 // pred_check_branch
      %16 = sbr.rel (0) target = $region13
    $region12: #{mlp_pallas.1} parent=1 // pred_region
      _
    $region13: #{mlp_pallas.1} parent=1 // pred_fallthru
      _
    // Predicated region
    $region14: #{mlp_pallas.1} parent=1 // pred_check
      _
    $region15: #{mlp_pallas.1} parent=1 // pred_check_branch
      %18 = sbr.rel (0) target = $region17
    $region16: #{mlp_pallas.1} parent=1 // pred_region
      _
    $region17: #{mlp_pallas.1} parent=1 // pred_fallthru
      _
    // Predicated region
    $region18: #{mlp_pallas.1} parent=1 // pred_check
      _
    $region19: #{mlp_pallas.1} parent=1 // pred_check_branch
      %20 = sbr.rel (0) target = $region21
    $region20: #{mlp_pallas.1} parent=1 // pred_region
      _
    $region21: #{mlp_pallas.1} parent=1 // pred_fallthru
      _
    %p21 = scmp.eq.s32.totalorder 0, 0
    // Predicated region
    $region22: #{mlp_pallas.1} parent=1 // pred_check
      %p22 = pneg %p21
    $region23: #{mlp_pallas.1} parent=1 // pred_check_branch
      %24 = sbr.rel (%p22) target = $region25
    $region24: #{mlp_pallas.1} parent=1 // pred_region
      %25 = vst [vmem:[#allocation2] sm:$0xff] 0.0
      %26 = vst [vmem:[#allocation2 + $0x8] sm:$0xff] 0.0
    $region25: #{mlp_pallas.1} parent=1 // pred_fallthru
      _
    %v27 = vld [vmem:[%s0] sm:$0xff]
    %v28 = vld [vmem:[%s0 + $0x8] sm:$0xff]
    %v29 = vld [vmem:[%s1] sm:$0xff]
    %v30 = vld [vmem:[%s1 + $0x8] sm:$0xff]
    %v31 = vld [vmem:[%s1 + $0x10] sm:$0xff]
    %v32 = vld [vmem:[%s1 + $0x18] sm:$0xff]
    %v33 = vld [vmem:[%s1 + $0x20] sm:$0xff]
    %v34 = vld [vmem:[%s1 + $0x28] sm:$0xff]
    %v35 = vld [vmem:[%s1 + $0x30] sm:$0xff]
    %v36 = vld [vmem:[%s1 + $0x38] sm:$0xff]
    %v37 = vld [vmem:[%s1 + $0x40] sm:$0xff]
    %v38 = vld [vmem:[%s1 + $0x48] sm:$0xff]
    %v39 = vld [vmem:[%s1 + $0x50] sm:$0xff]
    %v40 = vld [vmem:[%s1 + $0x58] sm:$0xff]
    %v41 = vld [vmem:[%s1 + $0x60] sm:$0xff]
    %v42 = vld [vmem:[%s1 + $0x68] sm:$0xff]
    %v43 = vld [vmem:[%s1 + $0x70] sm:$0xff]
    %v44 = vld [vmem:[%s1 + $0x78] sm:$0xff]
    %v45 = vld [vmem:[%s2] sm:$0x1]
    %v47 = vlaneseq
    %v48 = vshrl.u32 %v47, 7
    %v49 = vsub.s32 0, %v48
    %v50 = vrot.slane %v45, %v49
    %52 = vmatprep.subr.mxu0 0.0
    %53 = vmatpush1.msra.mxu0 %v29
    %54 = vmatprep.subr.mxu0 0.0
    %55 = vmatpush1.msra.mxu0 %v30
    %56 = vmatprep.subr.mxu0 0.0
    %57 = vmatpush1.msra.mxu0 %v31
    %58 = vmatprep.subr.mxu0 0.0
    %59 = vmatpush1.msra.mxu0 %v32
    %60 = vmatprep.subr.mxu0 0.0
    %61 = vmatpush1.msra.mxu0 %v33
    %62 = vmatprep.subr.mxu0 0.0
    %63 = vmatpush1.msra.mxu0 %v34
    %64 = vmatprep.subr.mxu0 0.0
    %65 = vmatpush1.msra.mxu0 %v35
    %66 = vmatprep.subr.mxu0 0.0
    %67 = vmatpush1.msra.mxu0 %v36
    %68 = vmatprep.subr.mxu0 0.0
    %69 = vmatpush1.msra.mxu0 %v37
    %70 = vmatprep.subr.mxu0 0.0
    %71 = vmatpush1.msra.mxu0 %v38
    %72 = vmatprep.subr.mxu0 0.0
    %73 = vmatpush1.msra.mxu0 %v39
    %74 = vmatprep.subr.mxu0 0.0
    %75 = vmatpush1.msra.mxu0 %v40
    %76 = vmatprep.subr.mxu0 0.0
    %77 = vmatpush1.msra.mxu0 %v41
    %78 = vmatprep.subr.mxu0 0.0
    %79 = vmatpush1.msra.mxu0 %v42
    %80 = vmatprep.subr.mxu0 0.0
    %81 = vmatpush1.msra.mxu0 %v43
    %82 = vmatprep.subr.mxu0 0.0
    %83 = vmatpush1.msra.mxu0 %v44
    %84 = vmatprep.subr.mxu0 0.0
    %85 = vmatpush1.msra.mxu0 0.0
    %86 = vmatprep.subr.mxu0 0.0
    %87 = vmatpush1.msra.mxu0 0.0
    %88 = vmatprep.subr.mxu0 0.0
    %89 = vmatpush1.msra.mxu0 0.0
    %90 = vmatprep.subr.mxu0 0.0
    %91 = vmatpush1.msra.mxu0 0.0
    %92 = vmatprep.subr.mxu0 0.0
    %93 = vmatpush1.msra.mxu0 0.0
    %94 = vmatprep.subr.mxu0 0.0
    %95 = vmatpush1.msra.mxu0 0.0
    %96 = vmatprep.subr.mxu0 0.0
    %97 = vmatpush1.msra.mxu0 0.0
    %98 = vmatprep.subr.mxu0 0.0
    %99 = vmatpush1.msra.mxu0 0.0
    %100 = vmatprep.subr.mxu0 0.0
    %101 = vmatpush1.msra.mxu0 0.0
    %102 = vmatprep.subr.mxu0 0.0
    %103 = vmatpush1.msra.mxu0 0.0
    %104 = vmatprep.subr.mxu0 0.0
    %105 = vmatpush1.msra.mxu0 0.0
    %106 = vmatprep.subr.mxu0 0.0
    %107 = vmatpush1.msra.mxu0 0.0
    %108 = vmatprep.subr.mxu0 0.0
    %109 = vmatpush1.msra.mxu0 0.0
    %110 = vmatprep.subr.mxu0 0.0
    %111 = vmatpush1.msra.mxu0 0.0
    %112 = vmatprep.subr.mxu0 0.0
    %113 = vmatpush1.msra.mxu0 0.0
    %114 = vmatprep.subr.mxu0 0.0
    %115 = vmatpush1.msra.mxu0 0.0
    %116 = vmatprep.mubr.f32.mxu0 0.0
    %117 = vmatmul.mubr.f32.gmra.mrb[0].mxu0 %v27
    %v118 = vpop.f32.mrb[0].mxu0
    %v119 = vadd.f32 %v50, %v118
    %v120 = vpop.f32.mrb[0].mxu0
    %121 = vmatprep.mubr.f32.mxu0 0.0
    %122 = vmatmul.mubr.f32.gmra.mrb[0].mxu0 %v28
    %v123 = vpop.f32.mrb[0].mxu0
    %v124 = vadd.f32 %v50, %v123
    %v125 = vpop.f32.mrb[0].mxu0
    %126 = vdwg.mxu0
    %v127 = vmul.f32 %v119, 0.5
    %v128 = vmul.f32 %v124, 0.5
    %v129 = vmul.f32 %v119, 0.70710677
    %v130 = vmul.f32 %v124, 0.70710677
    %v131 = verf.f32.pop %v129
    %v132 = verf.f32.pop %v130
    %v133 = vadd.f32 %v131, 1.0
    %v134 = vadd.f32 %v132, 1.0
    %v135 = vmul.f32 %v127, %v133
    %v136 = vmul.f32 %v128, %v134
    %v137 = vld [vmem:[#allocation2] sm:$0xff]
    %v138 = vld [vmem:[#allocation2 + $0x8] sm:$0xff]
    %v139 = vld [vmem:[%s3] sm:$0xff]
    %v140 = vld [vmem:[%s3 + $0x8] sm:$0xff]
    %v141 = vld [vmem:[%s3 + $0x10] sm:$0xff]
    %v142 = vld [vmem:[%s3 + $0x18] sm:$0xff]
    %v143 = vld [vmem:[%s3 + $0x20] sm:$0xff]
    %v144 = vld [vmem:[%s3 + $0x28] sm:$0xff]
    %v145 = vld [vmem:[%s3 + $0x30] sm:$0xff]
    %v146 = vld [vmem:[%s3 + $0x38] sm:$0xff]
    %v147 = vld [vmem:[%s3 + $0x40] sm:$0xff]
    %v148 = vld [vmem:[%s3 + $0x48] sm:$0xff]
    %v149 = vld [vmem:[%s3 + $0x50] sm:$0xff]
    %v150 = vld [vmem:[%s3 + $0x58] sm:$0xff]
    %v151 = vld [vmem:[%s3 + $0x60] sm:$0xff]
    %v152 = vld [vmem:[%s3 + $0x68] sm:$0xff]
    %v153 = vld [vmem:[%s3 + $0x70] sm:$0xff]
    %v154 = vld [vmem:[%s3 + $0x78] sm:$0xff]
    %155 = vmatprep.subr.mxu0 0.0
    %156 = vmatpush1.msra.mxu0 %v139
    %157 = vmatprep.subr.mxu0 0.0
    %158 = vmatpush1.msra.mxu0 %v140
    %159 = vmatprep.subr.mxu0 0.0
    %160 = vmatpush1.msra.mxu0 %v141
    %161 = vmatprep.subr.mxu0 0.0
    %162 = vmatpush1.msra.mxu0 %v142
    %163 = vmatprep.subr.mxu0 0.0
    %164 = vmatpush1.msra.mxu0 %v143
    %165 = vmatprep.subr.mxu0 0.0
    %166 = vmatpush1.msra.mxu0 %v144
    %167 = vmatprep.subr.mxu0 0.0
    %168 = vmatpush1.msra.mxu0 %v145
    %169 = vmatprep.subr.mxu0 0.0
    %170 = vmatpush1.msra.mxu0 %v146
    %171 = vmatprep.subr.mxu0 0.0
    %172 = vmatpush1.msra.mxu0 %v147
    %173 = vmatprep.subr.mxu0 0.0
    %174 = vmatpush1.msra.mxu0 %v148
    %175 = vmatprep.subr.mxu0 0.0
    %176 = vmatpush1.msra.mxu0 %v149
    %177 = vmatprep.subr.mxu0 0.0
    %178 = vmatpush1.msra.mxu0 %v150
    %179 = vmatprep.subr.mxu0 0.0
    %180 = vmatpush1.msra.mxu0 %v151
    %181 = vmatprep.subr.mxu0 0.0
    %182 = vmatpush1.msra.mxu0 %v152
    %183 = vmatprep.subr.mxu0 0.0
    %184 = vmatpush1.msra.mxu0 %v153
    %185 = vmatprep.subr.mxu0 0.0
    %186 = vmatpush1.msra.mxu0 %v154
    %187 = vmatprep.subr.mxu0 0.0
    %188 = vmatpush1.msra.mxu0 0.0
    %189 = vmatprep.subr.mxu0 0.0
    %190 = vmatpush1.msra.mxu0 0.0
    %191 = vmatprep.subr.mxu0 0.0
    %192 = vmatpush1.msra.mxu0 0.0
    %193 = vmatprep.subr.mxu0 0.0
    %194 = vmatpush1.msra.mxu0 0.0
    %195 = vmatprep.subr.mxu0 0.0
    %196 = vmatpush1.msra.mxu0 0.0
    %197 = vmatprep.subr.mxu0 0.0
    %198 = vmatpush1.msra.mxu0 0.0
    %199 = vmatprep.subr.mxu0 0.0
    %200 = vmatpush1.msra.mxu0 0.0
    %201 = vmatprep.subr.mxu0 0.0
    %202 = vmatpush1.msra.mxu0 0.0
    %203 = vmatprep.subr.mxu0 0.0
    %204 = vmatpush1.msra.mxu0 0.0
    %205 = vmatprep.subr.mxu0 0.0
    %206 = vmatpush1.msra.mxu0 0.0
    %207 = vmatprep.subr.mxu0 0.0
    %208 = vmatpush1.msra.mxu0 0.0
    %209 = vmatprep.subr.mxu0 0.0
    %210 = vmatpush1.msra.mxu0 0.0
    %211 = vmatprep.subr.mxu0 0.0
    %212 = vmatpush1.msra.mxu0 0.0
    %213 = vmatprep.subr.mxu0 0.0
    %214 = vmatpush1.msra.mxu0 0.0
    %215 = vmatprep.subr.mxu0 0.0
    %216 = vmatpush1.msra.mxu0 0.0
    %217 = vmatprep.subr.mxu0 0.0
    %218 = vmatpush1.msra.mxu0 0.0
    %219 = vmatprep.mubr.f32.mxu0 0.0
    %220 = vmatmul.mubr.f32.gmra.mrb[0].mxu0 %v135
    %v221 = vpop.f32.mrb[0].mxu0
    %v222 = vadd.f32 0.0, %v221
    %v223 = vpop.f32.mrb[0].mxu0
    %224 = vmatprep.mubr.f32.mxu0 0.0
    %225 = vmatmul.mubr.f32.gmra.mrb[0].mxu0 %v136
    %v226 = vpop.f32.mrb[0].mxu0
    %v227 = vadd.f32 0.0, %v226
    %v228 = vpop.f32.mrb[0].mxu0
    %229 = vdwg.mxu0
    %v230 = vadd.f32 %v137, %v222
    %v231 = vadd.f32 %v138, %v227
    %232 = vst [vmem:[#allocation2] sm:$0xff] %v230
    %233 = vst [vmem:[#allocation2 + $0x8] sm:$0xff] %v231
    // Predicated region
    $region26: #{mlp_pallas.1} parent=1 // pred_check
      %p234 = pneg %p21
    $region27: #{mlp_pallas.1} parent=1 // pred_check_branch
      %236 = sbr.rel (%p234) target = $region29
    $region28: #{mlp_pallas.1} parent=1 // pred_region
      %v237 = vld [vmem:[#allocation2] sm:$0xff]
      %v238 = vld [vmem:[#allocation2 + $0x8] sm:$0xff]
      %v239 = vld [vmem:[%s4] sm:$0x1]
      %v241 = vlaneseq
      %v242 = vshrl.u32 %v241, 7
      %v243 = vsub.s32 0, %v242
      %v244 = vrot.slane %v239, %v243
      %v246 = vadd.f32 %v237, %v244
      %v247 = vadd.f32 %v238, %v244
      %248 = vst [vmem:[#allocation3] sm:$0xff] %v246
      %249 = vst [vmem:[#allocation3 + $0x8] sm:$0xff] %v247
    $region29: #{mlp_pallas.1} parent=1 // pred_fallthru
      _
    // Predicated region
    $region30: #{mlp_pallas.1} parent=1 // pred_check
      _
    $region31: #{mlp_pallas.1} parent=1 // pred_check_branch
      %251 = sbr.rel (0) target = $region33
    $region32: #{mlp_pallas.1} parent=1 // pred_region
      %s253 = ssub.s32 256, 256
      %254 = vsyncadd [#allocation4], %s253
      %s255 = sshll.u32 [#allocation3], 4
      %s256 = int_to_ptr.vmem [resolvable:$true] %s255
      %261 = dma.vmem_to_hbm [thread:$0]  %s256, 256, %s5, [#allocation4], 128, 128, 8
    $region33: #{mlp_pallas.1} parent=1 // pred_fallthru
      _
    // Predicated region
    $region34: #{mlp_pallas.1} parent=1 // pred_check
      _
    $region35: #{mlp_pallas.1} parent=1 // pred_check_branch
      %263 = sbr.rel (0) target = $region37
    $region36: #{mlp_pallas.1} parent=1 // pred_region
      %264 = dma.done [#allocation4], 256
    $region37: #{mlp_pallas.1} parent=1 // pred_fallthru
      _
    %265 = vsyncpa [#allocation4], 1

</llo_original>
